<compile_context>
chip_gen: v7x
topology: tpu7x:2x2x1
jax: 0.10.0
libtpu: 0.0.40
codegen_flags: <defaults>
</compile_context>

<pallas_src>
import functools
import math

import jax
import jax.numpy as jnp
import numpy as np
from jax.experimental import pallas as pl
from jax.experimental.pallas import tpu as pltpu


def _mh_attention_map_kernel(
    q_ref,      # (1, Q, Dq)        f32
    k_ref,      # (1, Dq, HW)       f32
    wq_ref,     # (Dq, Hid)         bf16 (pre-transposed q_linear weight)
    bq_ref,     # (1, Hid)          f32
    wk_ref,     # (Hid, Dq)         bf16 (k_linear weight, natural orientation)
    bk_ref,     # (Hid, 1)          f32
    out_ref,    # (1, Q*nh, HW)     f32
    *, num_heads, scale):
    q = q_ref[0]                                  # (Q, Dq)
    k = k_ref[0]                                  # (Dq, HW)
    Q = q.shape[0]
    hid = wq_ref.shape[1]
    hd = hid // num_heads
    hw = k.shape[1]

    # ---- projections: bf16 MXU matmuls, f32 accumulation ----
    qp = jnp.dot(q.astype(jnp.bfloat16), wq_ref[...],
                 preferred_element_type=jnp.float32) + bq_ref[...]        # (Q, Hid)
    kp = jnp.dot(wk_ref[...], k.astype(jnp.bfloat16),
                 preferred_element_type=jnp.float32) + bk_ref[...]        # (Hid, HW)

    # ---- head-batched scores (single einsum, no per-head slicing/concat) ----
    qh = (qp * scale).reshape(Q, num_heads, hd)
    qh = jnp.transpose(qh, (1, 0, 2)).astype(jnp.bfloat16)                # (nh, Q, hd)
    kh = kp.reshape(num_heads, hd, hw).astype(jnp.bfloat16)               # (nh, hd, HW)
    s = jnp.einsum('nqc,ncs->nqs', qh, kh,
                   preferred_element_type=jnp.float32)                    # (nh, Q, HW)

    # PyTorch row ordering after torch.cat: index = q * num_heads + n
    s = jnp.transpose(s, (1, 0, 2)).reshape(Q * num_heads, hw)            # (Q*nh, HW)

    # ---- softmax over the whole flattened (Q*nh*HW) axis, f32 ----
    m = jnp.max(s, axis=(0, 1), keepdims=True)                            # (1, 1)
    e = jnp.exp(s - m)
    denom = jnp.sum(e, axis=(0, 1), keepdims=True)                        # (1, 1)
    p = e * pl.reciprocal(denom, approx=True)

    # dropout(p=0.0) / eval mode -> identity
    out_ref[0] = p.astype(out_ref.dtype)


def mh_attention_map(q, k, params, *, num_heads):
    """q: (B, Q, query_dim), k: (B, query_dim, H, W) -> (B, 1, Q*num_heads, H, W)."""
    B, Q, Dq = q.shape
    _, C, H, W = k.shape
    assert C == Dq
    HW = H * W

    wq = params["q_w"]                    # (Hid, Dq) -- PyTorch nn.Linear layout
    wk = params["k_w"]                    # (Hid, Dq)
    Hid = wq.shape[0]
    assert Hid % num_heads == 0
    scale = float(Hid / num_heads) ** -0.5

    # One-time HBM-side weight prep: pre-transpose wq, cast both weights to bf16.
    wq_t = jnp.transpose(wq).astype(jnp.bfloat16)      # (Dq, Hid)
    wk_b = wk.astype(jnp.bfloat16)                     # (Hid, Dq)
    bq = params["q_b"].reshape(1, Hid).astype(jnp.float32)
    bk = params["k_b"].reshape(Hid, 1).astype(jnp.float32)

    # Free contiguous reshape (no HBM transpose): spatial becomes the lane axis.
    k_flat = k.reshape(B, C, HW)

    out = pl.pallas_call(
        functools.partial(_mh_attention_map_kernel,
                          num_heads=num_heads, scale=scale),
        grid=(B,),
        in_specs=[
            pl.BlockSpec((1, Q, Dq), lambda b: (b, 0, 0)),        # q (per-batch)
            pl.BlockSpec((1, C, HW), lambda b: (b, 0, 0)),        # k (per-batch)
            pl.BlockSpec((Dq, Hid), lambda b: (0, 0)),            # wq^T  (invariant)
            pl.BlockSpec((1, Hid), lambda b: (0, 0)),             # bq
            pl.BlockSpec((Hid, Dq), lambda b: (0, 0)),            # wk
            pl.BlockSpec((Hid, 1), lambda b: (0, 0)),             # bk
        ],
        out_specs=pl.BlockSpec((1, Q * num_heads, HW), lambda b: (b, 0, 0)),
        out_shape=jax.ShapeDtypeStruct((B, Q * num_heads, HW), jnp.float32),
        compiler_params=pltpu.CompilerParams(
            dimension_semantics=("parallel",)),
    )(q, k_flat, wq_t, bq, wk_b, bk)

    # Free contiguous reshape back to the PyTorch output layout.
    return out.reshape(B, 1, Q * num_heads, H, W)


def mh_attention_map_ref(q, k, params, *, num_heads):
    """Pure-JAX f32 reference mirroring the PyTorch forward."""
    B, Q, Dq = q.shape
    _, C, H, W = k.shape
    wq, bq = params["q_w"], params["q_b"]
    wk, bk = params["k_w"], params["k_b"]
    Hid = wq.shape[0]
    hd = Hid // num_heads
    scale = float(Hid / num_heads) ** -0.5

    qp = jnp.einsum('bqd,hd->bqh', q, wq) + bq                             # (B,Q,Hid)
    kp = jnp.einsum('hd,bdxy->bhxy', wk, k) + bk[None, :, None, None]      # (B,Hid,H,W)
    qh = qp.reshape(B, Q, num_heads, hd)
    kh = kp.reshape(B, num_heads, hd, H, W)
    w = jnp.einsum('bqnc,bnchw->bqnhw', qh * scale, kh)                    # (B,Q,nh,H,W)
    w = w.reshape(B, 1, Q * num_heads, H, W)                               # cat over q, dim=2
    flat = jax.nn.softmax(w.reshape(B, 1, -1), axis=-1)
    return flat.reshape(B, 1, Q * num_heads, H, W)


if __name__ == "__main__":
    query_dim, hidden_dim, num_heads = 32, 32, 4
    B, Q, H, W = 2, 8, 16, 16

    key = jax.random.PRNGKey(0)
    kq, kk, kwq, kwk = jax.random.split(key, 4)
    q = jax.random.normal(kq, (B, Q, query_dim), jnp.float32)
    k = jax.random.normal(kk, (B, query_dim, H, W), jnp.float32)

    # Match the module's init: xavier_uniform weights, zero biases.
    limit = math.sqrt(6.0 / (hidden_dim + query_dim))
    params = {
        "q_w": jax.random.uniform(kwq, (hidden_dim, query_dim), jnp.float32, -limit, limit),
        "q_b": jnp.zeros((hidden_dim,), jnp.float32),
        "k_w": jax.random.uniform(kwk, (hidden_dim, query_dim), jnp.float32, -limit, limit),
        "k_b": jnp.zeros((hidden_dim,), jnp.float32),
    }

    out = mh_attention_map(q, k, params, num_heads=num_heads)
    jax.block_until_ready(out)
    assert out.shape == (B, 1, Q * num_heads, H, W)

    ref = mh_attention_map_ref(q, k, params, num_heads=num_heads)
    np.testing.assert_allclose(np.asarray(out), np.asarray(ref), rtol=0.1, atol=2e-5)
    print("KERNEL_OK")
</pallas_src>

<mosaic_0001>
module attributes {stable_mosaic.version = 11 : i64} {
  func.func @_mh_attention_map_kernel(%arg0: i32, %arg1: memref<1x8x32xf32, #tpu.memory_space<vmem>>, %arg2: memref<1x32x256xf32, #tpu.memory_space<vmem>>, %arg3: memref<32x32xbf16, #tpu.memory_space<vmem>>, %arg4: memref<1x32xf32, #tpu.memory_space<vmem>>, %arg5: memref<32x32xbf16, #tpu.memory_space<vmem>>, %arg6: memref<32x1xf32, #tpu.memory_space<vmem>>, %arg7: memref<1x32x256xf32, #tpu.memory_space<vmem>>) attributes {dimension_semantics = [#tpu.dimension_semantics<parallel>], iteration_bounds = array<i64: 2>, scalar_prefetch = 0 : i64, scratch_operands = 0 : i64, tpu.core_type = #tpu.core_type<tc>, window_params = [{transform_indices = @transform_0, window_bounds = array<i64: 1, 8, 32>}, {transform_indices = @transform_1, window_bounds = array<i64: 1, 32, 256>}, {pipeline_mode = #tpu.pipeline_mode<synchronous>, transform_indices = @transform_2, window_bounds = array<i64: 32, 32>}, {pipeline_mode = #tpu.pipeline_mode<synchronous>, transform_indices = @transform_3, window_bounds = array<i64: 1, 32>}, {pipeline_mode = #tpu.pipeline_mode<synchronous>, transform_indices = @transform_4, window_bounds = array<i64: 32, 32>}, {pipeline_mode = #tpu.pipeline_mode<synchronous>, transform_indices = @transform_5, window_bounds = array<i64: 32, 1>}, {transform_indices = @transform_6, window_bounds = array<i64: 1, 32, 256>}]} {
    %c0 = arith.constant 0 : index
    %c0_0 = arith.constant 0 : index
    %c0_1 = arith.constant 0 : index
    %0 = vector.load %arg1[%c0, %c0_0, %c0_1] : memref<1x8x32xf32, #tpu.memory_space<vmem>>, vector<1x8x32xf32>
    %1 = vector.shape_cast %0 : vector<1x8x32xf32> to vector<8x32xf32>
    %c0_2 = arith.constant 0 : index
    %c0_3 = arith.constant 0 : index
    %c0_4 = arith.constant 0 : index
    %2 = vector.load %arg2[%c0_2, %c0_3, %c0_4] : memref<1x32x256xf32, #tpu.memory_space<vmem>>, vector<1x32x256xf32>
    %3 = vector.shape_cast %2 : vector<1x32x256xf32> to vector<32x256xf32>
    %4 = arith.truncf %1 : vector<8x32xf32> to vector<8x32xbf16>
    %c0_5 = arith.constant 0 : index
    %c0_6 = arith.constant 0 : index
    %5 = vector.load %arg3[%c0_5, %c0_6] : memref<32x32xbf16, #tpu.memory_space<vmem>>, vector<32x32xbf16>
    %cst = arith.constant dense<0.000000e+00> : vector<8x32xf32>
    %6 = tpu.matmul %4, %5, %cst {dimension_numbers = #tpu.dot_dimension_numbers<[1], [0], [0], [1], [0, 0, 1, 1], [], []>} : vector<8x32xbf16>, vector<32x32xbf16>, vector<8x32xf32> -> vector<8x32xf32>
    %c0_7 = arith.constant 0 : index
    %c0_8 = arith.constant 0 : index
    %7 = vector.load %arg4[%c0_7, %c0_8] : memref<1x32xf32, #tpu.memory_space<vmem>>, vector<1x32xf32>
    %8 = vector.broadcast %7 : vector<1x32xf32> to vector<8x32xf32>
    %9 = arith.addf %6, %8 : vector<8x32xf32>
    %c0_9 = arith.constant 0 : index
    %c0_10 = arith.constant 0 : index
    %10 = vector.load %arg5[%c0_9, %c0_10] : memref<32x32xbf16, #tpu.memory_space<vmem>>, vector<32x32xbf16>
    %11 = arith.truncf %3 : vector<32x256xf32> to vector<32x256xbf16>
    %cst_11 = arith.constant dense<0.000000e+00> : vector<32x256xf32>
    %12 = tpu.matmul %10, %11, %cst_11 {dimension_numbers = #tpu.dot_dimension_numbers<[1], [0], [0], [1], [0, 0, 1, 1], [], []>} : vector<32x32xbf16>, vector<32x256xbf16>, vector<32x256xf32> -> vector<32x256xf32>
    %c0_12 = arith.constant 0 : index
    %c0_13 = arith.constant 0 : index
    %13 = vector.load %arg6[%c0_12, %c0_13] : memref<32x1xf32, #tpu.memory_space<vmem>>, vector<32x1xf32>
    %14 = vector.broadcast %13 : vector<32x1xf32> to vector<32x256xf32>
    %15 = arith.addf %12, %14 : vector<32x256xf32>
    %cst_14 = arith.constant 0.353553385 : f32
    %16 = vector.broadcast %cst_14 : f32 to vector<8x32xf32>
    %17 = arith.mulf %9, %16 : vector<8x32xf32>
    %18 = vector.shape_cast %17 : vector<8x32xf32> to vector<8x4x8xf32>
    %19 = tpu.transpose %18, [1, 0, 2] : vector<8x4x8xf32> -> vector<4x8x8xf32>
    %20 = arith.truncf %19 : vector<4x8x8xf32> to vector<4x8x8xbf16>
    %21 = vector.shape_cast %15 : vector<32x256xf32> to vector<4x8x256xf32>
    %22 = arith.truncf %21 : vector<4x8x256xf32> to vector<4x8x256xbf16>
    "tpu.trace_start"() <{level = 10 : i32, message = "nqc,ncs->nqs"}> : () -> ()
    %cst_15 = arith.constant dense<0.000000e+00> : vector<4x8x256xf32>
    %23 = tpu.matmul %20, %22, %cst_15 {dimension_numbers = #tpu.dot_dimension_numbers<[2], [1], [1], [2], [0, 0, 0, 1, 1, 2], [0], [0]>} : vector<4x8x8xbf16>, vector<4x8x256xbf16>, vector<4x8x256xf32> -> vector<4x8x256xf32>
    "tpu.trace_stop"() : () -> ()
    %24 = tpu.transpose %23, [1, 0, 2] : vector<4x8x256xf32> -> vector<8x4x256xf32>
    %25 = vector.shape_cast %24 : vector<8x4x256xf32> to vector<32x256xf32>
    %26 = vector.shape_cast %25 : vector<32x256xf32> to vector<1x32x256xf32>
    %cst_16 = arith.constant dense<0xFF800000> : vector<1xf32>
    %27 = vector.multi_reduction <maximumf>, %26, %cst_16 [1, 2] : vector<1x32x256xf32> to vector<1xf32>
    %28 = vector.shape_cast %27 : vector<1xf32> to vector<1x1x1xf32>
    %29 = vector.extract %28[0, 0, 0] : f32 from vector<1x1x1xf32>
    %30 = vector.broadcast %29 : f32 to vector<1x1xf32>
    %31 = vector.broadcast %30 : vector<1x1xf32> to vector<32x256xf32>
    %32 = arith.subf %25, %31 : vector<32x256xf32>
    %33 = math.exp %32 : vector<32x256xf32>
    %34 = vector.shape_cast %33 : vector<32x256xf32> to vector<1x32x256xf32>
    %cst_17 = arith.constant dense<0.000000e+00> : vector<1xf32>
    %35 = vector.multi_reduction <add>, %34, %cst_17 [1, 2] : vector<1x32x256xf32> to vector<1xf32>
    %36 = vector.shape_cast %35 : vector<1xf32> to vector<1x1x1xf32>
    %37 = vector.extract %36[0, 0, 0] : f32 from vector<1x1x1xf32>
    %38 = vector.broadcast %37 : f32 to vector<1x1xf32>
    %39 = tpu.reciprocal %38 {approx = true} : vector<1x1xf32> -> vector<1x1xf32>
    %40 = vector.broadcast %39 : vector<1x1xf32> to vector<32x256xf32>
    %41 = arith.mulf %33, %40 : vector<32x256xf32>
    %c0_18 = arith.constant 0 : index
    %c0_19 = arith.constant 0 : index
    %c0_20 = arith.constant 0 : index
    %42 = vector.load %arg7[%c0_18, %c0_19, %c0_20] : memref<1x32x256xf32, #tpu.memory_space<vmem>>, vector<1x32x256xf32>
    %43 = vector.shape_cast %42 : vector<1x32x256xf32> to vector<32x256xf32>
    %44 = vector.shape_cast %41 : vector<32x256xf32> to vector<1x32x256xf32>
    tpu.vector_store %arg7[%c0_18, %c0_19, %c0_20], %44 {strides = array<i32>} : memref<1x32x256xf32, #tpu.memory_space<vmem>>, vector<1x32x256xf32>,
    return
  }
  func.func @transform_0(%arg0: i32) -> (i32, i32, i32) {
    %c0_i32 = arith.constant 0 : i32
    %c0_i32_0 = arith.constant 0 : i32
    %c0_i32_1 = arith.constant 0 : i32
    return %arg0, %c0_i32, %c0_i32_0 : i32, i32, i32
  }
  func.func @transform_1(%arg0: i32) -> (i32, i32, i32) {
    %c0_i32 = arith.constant 0 : i32
    %c0_i32_0 = arith.constant 0 : i32
    %c0_i32_1 = arith.constant 0 : i32
    return %arg0, %c0_i32, %c0_i32_0 : i32, i32, i32
  }
  func.func @transform_2(%arg0: i32) -> (i32, i32) {
    %c0_i32 = arith.constant 0 : i32
    %c0_i32_0 = arith.constant 0 : i32
    %c0_i32_1 = arith.constant 0 : i32
    return %c0_i32, %c0_i32_0 : i32, i32
  }
  func.func @transform_3(%arg0: i32) -> (i32, i32) {
    %c0_i32 = arith.constant 0 : i32
    %c0_i32_0 = arith.constant 0 : i32
    %c0_i32_1 = arith.constant 0 : i32
    return %c0_i32, %c0_i32_0 : i32, i32
  }
  func.func @transform_4(%arg0: i32) -> (i32, i32) {
    %c0_i32 = arith.constant 0 : i32
    %c0_i32_0 = arith.constant 0 : i32
    %c0_i32_1 = arith.constant 0 : i32
    return %c0_i32, %c0_i32_0 : i32, i32
  }
  func.func @transform_5(%arg0: i32) -> (i32, i32) {
    %c0_i32 = arith.constant 0 : i32
    %c0_i32_0 = arith.constant 0 : i32
    %c0_i32_1 = arith.constant 0 : i32
    return %c0_i32, %c0_i32_0 : i32, i32
  }
  func.func @transform_6(%arg0: i32) -> (i32, i32, i32) {
    %c0_i32 = arith.constant 0 : i32
    %c0_i32_0 = arith.constant 0 : i32
    %c0_i32_1 = arith.constant 0 : i32
    return %arg0, %c0_i32, %c0_i32_0 : i32, i32, i32
  }
}

</mosaic_0001>

<llo_original>
// kernel: tpu_custom_call.1
$region0: #{tpu_custom_call.1}
  #allocation0 [shape = 'u32[]', space=smem, size = 0x4, offset = 0x4, fixed_abs, tag = 'smem constant byte address 0x4 - core index']
  #allocation1 [shape = 'u32[144,128]{1,0:T(1,128)}', space=vmem, size = 0x12000, scoped, tag = 'internal scratch']
  %s0 = inlined_call_operand.vmem [shape: f32[2,8,32], index: 0, kind: input, shape index: {}]
  %s1 = inlined_call_operand.hbm [shape: f32[2,32,256], index: 1, kind: input, shape index: {}]
  %s2 = inlined_call_operand.vmem [shape: bf16[32,32], index: 2, kind: input, shape index: {}]
  %s3 = inlined_call_operand.hbm [shape: f32[1,32], index: 3, kind: input, shape index: {}]
  %s4 = inlined_call_operand.vmem [shape: bf16[32,32], index: 4, kind: input, shape index: {}]
  %s5 = inlined_call_operand.vmem [shape: f32[32,1], index: 5, kind: input, shape index: {}]
  %s6 = inlined_call_operand.hbm [shape: f32[2,32,256], index: 6, kind: output, shape index: {}]
  %s7 = sld [smem:[#allocation0]]
  $region65: #{tpu_custom_call.1} parent=0
    _
  %s9 = ssub.s32 1, %s7
  %s10 = scalar_select 0, %s9, %s7
  $region1: #{tpu_custom_call.1} parent=0
    #allocation2 [shape = 'u8[65536]{0}', space=vmem, size = 0x10000, scoped, tag = 'input window, operand 1']
    #allocation3 [shape = 's32[2]{0}', space=sflag, size = 0x8, scoped, tag = 'scoped memory for tpu_custom_call.1']
    #allocation4 [shape = 's32[2]{0}', space=sflag, size = 0x8, scoped, tag = 'scoped memory for tpu_custom_call.1']
    #allocation5 [shape = 'u8[512]{0}', space=vmem, size = 0x400, scoped, tag = 'input window, operand 3, single buffered']
    #allocation6 [shape = 's32[1]{0}', space=sflag, size = 0x4, scoped, tag = 'scoped memory for tpu_custom_call.1']
    #allocation7 [shape = 'u8[65536]{0}', space=vmem, size = 0x10000, scoped, tag = 'output window, operand 0']
    %11 = vsyncpa [#allocation3], 0
    %s12 = scalar_lea.sflag [#allocation3], 1
    %13 = vsyncpa %s12, 0
    %14 = vsyncpa [#allocation6], 0
    %15 = vsyncpa [#allocation4], 0
    %s16 = scalar_lea.sflag [#allocation4], 1
    %17 = vsyncpa %s16, 0
    loop: start=0, step=1, limit=4
    $region2: #{tpu_custom_call.1} parent=1 // loop_pre_header
      _
    $region3: #{tpu_custom_call.1} parent=1 // loop_header
      %s19 = sphi 0, %s23
      %p20 = scmp.ge.s32.totalorder %s19, 4
      %s29 = sphi 0, %s31
      %s32 = sphi 0, %s29
      %s33 = sphi 0, %s32
      %s49 = sphi 0, %s33
      %s55 = sphi 0, %s57
      %s58 = sphi 0, %s55
      %s59 = sphi 0, %s58
      %s75 = sphi 0, %s59
      %s79 = sphi 0, %s79
      %s81 = sphi 0, %s79
      %s82 = sphi 0, %s81
      %s96 = sphi 0, %s82
      %s100 = sphi 0, %s100
      %s102 = sphi 0, %s100
      %s103 = sphi 0, %s102
      %s117 = sphi 0, %s103
      %s121 = sphi 0, %s121
      %s123 = sphi 0, %s121
      %s124 = sphi 0, %s123
      %s138 = sphi 0, %s124
      %s142 = sphi 0, %s142
      %s144 = sphi 0, %s142
      %s145 = sphi 0, %s144
      %s159 = sphi 0, %s145
      %s165 = sphi 0, %s167
      %s168 = sphi 0, %s165
      %s169 = sphi 0, %s168
      %s185 = sphi 0, %s169
    $region4: #{tpu_custom_call.1} parent=1 // loop_header_branch
      %22 = sbr.rel (%p20) target = $region8
    $region5: #{tpu_custom_call.1} parent=1 // loop_body
      %s24 = ssub.s32 %s19, 1
      %s25 = ssub.s32 %s19, 2
      %s26 = sadd.s32 %s19, 1
      %s27 = ssub.s32 %s19, %s26
      %p28 = scmp.eq.s32.totalorder %s27, 0
      %s30 = sadd.s32 %s29, 1
      %s31 = scalar_select %p28, %s29, %s30
      %p34 = pneg %p28
      %p35 = scmp.eq.s32.totalorder %s19, 1
      %p36 = por %p34, %p35
      %p37 = scmp.ne.s32.totalorder %s29, %s32
      %p38 = scmp.eq.s32.totalorder %s19, 0
      %p39 = por %p37, %p38
      %p40 = scmp.ne.s32.totalorder %s29, %s32
      %p41 = scmp.eq.s32.totalorder %s24, 1
      %p42 = por %p40, %p41
      %p43 = scmp.ne.s32.totalorder %s32, %s33
      %p44 = scmp.eq.s32.totalorder %s24, 0
      %p45 = por %p43, %p44
      %p46 = scmp.ne.s32.totalorder %s32, %s33
      %p47 = scmp.eq.s32.totalorder %s25, 1
      %p48 = por %p46, %p47
      %p50 = scmp.ne.s32.totalorder %s33, %s49
      %p51 = scmp.eq.s32.totalorder %s25, 0
      %p52 = por %p50, %p51
      %s53 = ssub.s32 %s19, %s26
      %p54 = scmp.eq.s32.totalorder %s53, 0
      %s56 = sadd.s32 %s55, 1
      %s57 = scalar_select %p54, %s55, %s56
      %p60 = pneg %p54
      %p61 = scmp.eq.s32.totalorder %s19, 1
      %p62 = por %p60, %p61
      %p63 = scmp.ne.s32.totalorder %s55, %s58
      %p64 = scmp.eq.s32.totalorder %s19, 0
      %p65 = por %p63, %p64
      %p66 = scmp.ne.s32.totalorder %s55, %s58
      %p67 = scmp.eq.s32.totalorder %s24, 1
      %p68 = por %p66, %p67
      %p69 = scmp.ne.s32.totalorder %s58, %s59
      %p70 = scmp.eq.s32.totalorder %s24, 0
      %p71 = por %p69, %p70
      %p72 = scmp.ne.s32.totalorder %s58, %s59
      %p73 = scmp.eq.s32.totalorder %s25, 1
      %p74 = por %p72, %p73
      %p76 = scmp.ne.s32.totalorder %s59, %s75
      %p77 = scmp.eq.s32.totalorder %s25, 0
      %p78 = por %p76, %p77
      %s80 = sadd.s32 %s79, 1
      %p83 = scmp.eq.s32.totalorder %s19, 1
      %p84 = scmp.ne.s32.totalorder %s79, %s81
      %p85 = scmp.eq.s32.totalorder %s19, 0
      %p86 = por %p84, %p85
      %p87 = scmp.ne.s32.totalorder %s79, %s81
      %p88 = scmp.eq.s32.totalorder %s24, 1
      %p89 = por %p87, %p88
      %p90 = scmp.ne.s32.totalorder %s81, %s82
      %p91 = scmp.eq.s32.totalorder %s24, 0
      %p92 = por %p90, %p91
      %p93 = scmp.ne.s32.totalorder %s81, %s82
      %p94 = scmp.eq.s32.totalorder %s25, 1
      %p95 = por %p93, %p94
      %p97 = scmp.ne.s32.totalorder %s82, %s96
      %p98 = scmp.eq.s32.totalorder %s25, 0
      %p99 = por %p97, %p98
      %s101 = sadd.s32 %s100, 1
      %p104 = scmp.eq.s32.totalorder %s19, 1
      %p105 = scmp.ne.s32.totalorder %s100, %s102
      %p106 = scmp.eq.s32.totalorder %s19, 0
      %p107 = por %p105, %p106
      %p108 = scmp.ne.s32.totalorder %s100, %s102
      %p109 = scmp.eq.s32.totalorder %s24, 1
      %p110 = por %p108, %p109
      %p111 = scmp.ne.s32.totalorder %s102, %s103
      %p112 = scmp.eq.s32.totalorder %s24, 0
      %p113 = por %p111, %p112
      %p114 = scmp.ne.s32.totalorder %s102, %s103
      %p115 = scmp.eq.s32.totalorder %s25, 1
      %p116 = por %p114, %p115
      %p118 = scmp.ne.s32.totalorder %s103, %s117
      %p119 = scmp.eq.s32.totalorder %s25, 0
      %p120 = por %p118, %p119
      %s122 = sadd.s32 %s121, 1
      %p125 = scmp.eq.s32.totalorder %s19, 1
      %p126 = scmp.ne.s32.totalorder %s121, %s123
      %p127 = scmp.eq.s32.totalorder %s19, 0
      %p128 = por %p126, %p127
      %p129 = scmp.ne.s32.totalorder %s121, %s123
      %p130 = scmp.eq.s32.totalorder %s24, 1
      %p131 = por %p129, %p130
      %p132 = scmp.ne.s32.totalorder %s123, %s124
      %p133 = scmp.eq.s32.totalorder %s24, 0
      %p134 = por %p132, %p133
      %p135 = scmp.ne.s32.totalorder %s123, %s124
      %p136 = scmp.eq.s32.totalorder %s25, 1
      %p137 = por %p135, %p136
      %p139 = scmp.ne.s32.totalorder %s124, %s138
      %p140 = scmp.eq.s32.totalorder %s25, 0
      %p141 = por %p139, %p140
      %s143 = sadd.s32 %s142, 1
      %p146 = scmp.eq.s32.totalorder %s19, 1
      %p147 = scmp.ne.s32.totalorder %s142, %s144
      %p148 = scmp.eq.s32.totalorder %s19, 0
      %p149 = por %p147, %p148
      %p150 = scmp.ne.s32.totalorder %s142, %s144
      %p151 = scmp.eq.s32.totalorder %s24, 1
      %p152 = por %p150, %p151
      %p153 = scmp.ne.s32.totalorder %s144, %s145
      %p154 = scmp.eq.s32.totalorder %s24, 0
      %p155 = por %p153, %p154
      %p156 = scmp.ne.s32.totalorder %s144, %s145
      %p157 = scmp.eq.s32.totalorder %s25, 1
      %p158 = por %p156, %p157
      %p160 = scmp.ne.s32.totalorder %s145, %s159
      %p161 = scmp.eq.s32.totalorder %s25, 0
      %p162 = por %p160, %p161
      %s163 = ssub.s32 %s19, %s26
      %p164 = scmp.eq.s32.totalorder %s163, 0
      %s166 = sadd.s32 %s165, 1
      %s167 = scalar_select %p164, %s165, %s166
      %p170 = pneg %p164
      %p171 = scmp.eq.s32.totalorder %s19, 1
      %p172 = por %p170, %p171
      %p173 = scmp.ne.s32.totalorder %s165, %s168
      %p174 = scmp.eq.s32.totalorder %s19, 0
      %p175 = por %p173, %p174
      %p176 = scmp.ne.s32.totalorder %s165, %s168
      %p177 = scmp.eq.s32.totalorder %s24, 1
      %p178 = por %p176, %p177
      %p179 = scmp.ne.s32.totalorder %s168, %s169
      %p180 = scmp.eq.s32.totalorder %s24, 0
      %p181 = por %p179, %p180
      %p182 = scmp.ne.s32.totalorder %s168, %s169
      %p183 = scmp.eq.s32.totalorder %s25, 1
      %p184 = por %p182, %p183
      %p186 = scmp.ne.s32.totalorder %s169, %s185
      %p187 = scmp.eq.s32.totalorder %s25, 0
      %p188 = por %p186, %p187
      %p189 = scmp.le.s32.totalorder 1, %s19
      %p190 = scmp.lt.s32.totalorder %s19, 3
      %p191 = pnand %p189, %p190
      %p192 = pneg %p191
      // Predicated region
      $region9: #{tpu_custom_call.1} parent=5 // pred_check
        _
      $region10: #{tpu_custom_call.1} parent=5 // pred_check_branch
        %194 = sbr.rel (%p191) target = $region12
      $region11: #{tpu_custom_call.1} parent=5 // pred_region
        %s195 = ssub.s32 %s19, 1
        // Predicated region
        $region13: #{tpu_custom_call.1} parent=11 // pred_check
          %p196 = pneg %p92
        $region14: #{tpu_custom_call.1} parent=11 // pred_check_branch
          %198 = sbr.rel (%p196) target = $region16
        $region15: #{tpu_custom_call.1} parent=11 // pred_region
          _
        $region16: #{tpu_custom_call.1} parent=11 // pred_fallthru
          _
        // Predicated region
        $region17: #{tpu_custom_call.1} parent=11 // pred_check
          %p199 = pneg %p113
        $region18: #{tpu_custom_call.1} parent=11 // pred_check_branch
          %201 = sbr.rel (%p199) target = $region20
        $region19: #{tpu_custom_call.1} parent=11 // pred_region
          %s203 = ssub.s32 16, 16
          %204 = vsyncadd [#allocation6], %s203
          %s206 = sshll.u32 [#allocation5], 4
          %s207 = int_to_ptr.vmem [resolvable:$true] %s206
          %209 = dma.hbm_to_vmem [thread:$0]  %s3, 16, %s207, [#allocation6]
        $region20: #{tpu_custom_call.1} parent=11 // pred_fallthru
          _
        // Predicated region
        $region21: #{tpu_custom_call.1} parent=11 // pred_check
          %p210 = pneg %p134
        $region22: #{tpu_custom_call.1} parent=11 // pred_check_branch
          %212 = sbr.rel (%p210) target = $region24
        $region23: #{tpu_custom_call.1} parent=11 // pred_region
          _
        $region24: #{tpu_custom_call.1} parent=11 // pred_fallthru
          _
        // Predicated region
        $region25: #{tpu_custom_call.1} parent=11 // pred_check
          %p213 = pneg %p155
        $region26: #{tpu_custom_call.1} parent=11 // pred_check_branch
          %215 = sbr.rel (%p213) target = $region28
        $region27: #{tpu_custom_call.1} parent=11 // pred_region
          _
        $region28: #{tpu_custom_call.1} parent=11 // pred_fallthru
          _
      $region12: #{tpu_custom_call.1} parent=5 // pred_fallthru
        _
      %p216 = scmp.lt.s32.totalorder %s19, 2
      // Predicated region
      $region29: #{tpu_custom_call.1} parent=5 // pred_check
        %p217 = pneg %p216
      $region30: #{tpu_custom_call.1} parent=5 // pred_check_branch
        %219 = sbr.rel (%p217) target = $region32
      $region31: #{tpu_custom_call.1} parent=5 // pred_region
        // Predicated region
        $region33: #{tpu_custom_call.1} parent=31 // pred_check
          %p220 = pneg %p39
        $region34: #{tpu_custom_call.1} parent=31 // pred_check_branch
          %222 = sbr.rel (%p220) target = $region36
        $region35: #{tpu_custom_call.1} parent=31 // pred_region
          %p223 = scmp.lt.s32.totalorder %s19, 1
          %s224 = scalar_select %p223, %s19, 1
          %s225 = smul.addr %s224, 8
          %s226 = scalar_lea.vmem %s0, %s225
        $region36: #{tpu_custom_call.1} parent=31 // pred_fallthru
          _
        // Predicated region
        $region37: #{tpu_custom_call.1} parent=31 // pred_check
          %p227 = pneg %p65
        $region38: #{tpu_custom_call.1} parent=31 // pred_check_branch
          %229 = sbr.rel (%p227) target = $region40
        $region39: #{tpu_custom_call.1} parent=31 // pred_region
          %s230 = sand.u32 %s55, 1
          %s231 = scalar_lea.sflag [#allocation3], %s230
          %s232 = sand.u32 %s55, 1
          %s233 = smul.addr %s232, 64
          %s234 = scalar_lea.vmem [#allocation2], %s233
          %s236 = ssub.s32 1024, 1024
          %237 = vsyncadd %s231, %s236
          %s238 = smul.addr %s19, 8
          %s239 = smul.addr %s238, 128
          %s240 = scalar_lea.hbm %s1, %s239
          %s241 = sshll.u32 %s234, 4
          %s242 = int_to_ptr.vmem [resolvable:$true] %s241
          %247 = dma.hbm_to_vmem [thread:$0]  %s240, 1024, %s242, %s231, 256, 256, 16
        $region40: #{tpu_custom_call.1} parent=31 // pred_fallthru
          _
      $region32: #{tpu_custom_call.1} parent=5 // pred_fallthru
        _
      %p248 = scmp.le.s32.totalorder 1, %s19
      %p249 = scmp.lt.s32.totalorder %s19, 3
      %p250 = pnand %p248, %p249
      %p251 = pneg %p250
      // Predicated region
      $region41: #{tpu_custom_call.1} parent=5 // pred_check
        _
      $region42: #{tpu_custom_call.1} parent=5 // pred_check_branch
        %253 = sbr.rel (%p250) target = $region44
      $region43: #{tpu_custom_call.1} parent=5 // pred_region
        %s254 = ssub.s32 %s19, 1
        %s255 = sand.u32 %s58, 1
        %s256 = scalar_lea.sflag [#allocation3], %s255
        %s257 = sand.u32 %s58, 1
        %s258 = smul.addr %s257, 64
        %s259 = scalar_lea.vmem [#allocation2], %s258
        // Predicated region
        $region45: #{tpu_custom_call.1} parent=43 // pred_check
          %p260 = pneg %p71
        $region46: #{tpu_custom_call.1} parent=43 // pred_check_branch
          %262 = sbr.rel (%p260) target = $region48
        $region47: #{tpu_custom_call.1} parent=43 // pred_region
          %263 = dma.done %s256, 1024
        $region48: #{tpu_custom_call.1} parent=43 // pred_fallthru
          _
        // Predicated region
        $region49: #{tpu_custom_call.1} parent=43 // pred_check
          %p264 = pneg %p113
        $region50: #{tpu_custom_call.1} parent=43 // pred_check_branch
          %266 = sbr.rel (%p264) target = $region52
        $region51: #{tpu_custom_call.1} parent=43 // pred_region
          %267 = dma.done [#allocation6], 16
        $region52: #{tpu_custom_call.1} parent=43 // pred_fallthru
          _
        %p268 = scmp.lt.s32.totalorder %s24, 1
        %s269 = scalar_select %p268, %s24, 1
        %s270 = smul.addr %s269, 8
        %s271 = scalar_lea.vmem %s0, %s270
        %p272 = pneg %p45
        %p273 = pneg %p42
        %s274 = sand.u32 %s58, 1
        %s275 = scalar_lea.sflag [#allocation3], %s274
        %s276 = sand.u32 %s58, 1
        %s277 = smul.addr %s276, 64
        %s278 = scalar_lea.vmem [#allocation2], %s277
        %p279 = pneg %p71
        %p280 = pneg %p68
        %p281 = pneg %p92
        %p282 = pneg %p89
        %p283 = pneg %p113
        %p284 = pneg %p110
        %p285 = pneg %p134
        %p286 = pneg %p131
        %p287 = pneg %p155
        %p288 = pneg %p152
        %p289 = pneg %p181
        %p290 = pneg %p178
        %s291 = sand.u32 %s168, 1
        %s292 = scalar_lea.sflag [#allocation4], %s291
        %s293 = sand.u32 %s168, 1
        %s294 = smul.addr %s293, 64
        %s295 = scalar_lea.vmem [#allocation7], %s294
        %p296 = scmp.lt.s32.totalorder %s24, 1
        %s297 = scalar_select %p296, %s24, 1
        %s298 = smul.addr %s297, 8
        %s299 = scalar_lea.vmem %s0, %s298
        %v301 = vld [vmem:[%s299] sm:$0xff]
        %v302 = vld [vmem:[%s259] sm:$0xff]
        %v303 = vld [vmem:[%s259 + $0x8] sm:$0xff]
        %v304 = vld [vmem:[%s259 + $0x10] sm:$0xff]
        %v305 = vld [vmem:[%s259 + $0x18] sm:$0xff]
        %v306 = vld [vmem:[%s259 + $0x20] sm:$0xff]
        %v307 = vld [vmem:[%s259 + $0x28] sm:$0xff]
        %v308 = vld [vmem:[%s259 + $0x30] sm:$0xff]
        %v309 = vld [vmem:[%s259 + $0x38] sm:$0xff]
        %v310 = vpack.c.bf16 %v301, %v301
        %v311 = vld [vmem:[%s2] sm:$0xf]
        %v312 = vld [vmem:[%s2 + $0x4] sm:$0xf]
        %v313 = vld [vmem:[%s2 + $0x8] sm:$0xf]
        %v314 = vld [vmem:[%s2 + $0xc] sm:$0xf]
        %v315 = vld [vmem:[#allocation5] sm:$0x1]
        %v317 = vlaneseq
        %v318 = vshrl.u32 %v317, 7
        %v319 = vsub.s32 0, %v318
        %v320 = vrot.slane %v315, %v319
        %v326 = vunpack.c.l.b16 %v311
        %v327 = vunpack.c.l.b16 %v312
        %v328 = vunpack.c.l.b16 %v313
        %v329 = vunpack.c.l.b16 %v314
        %v330 = vpack.c.b16 %v327, %v326
        %v331 = vpack.c.b16 %v329, %v328
        %vm334 = vcmask 261120
        %v336 = vsel %vm334, %v310, 0
        %338 = vmatprep.subr.bf16.mxu0 0
        %339 = vmatpush1.bf16.msra.mxu0 %v330
        %340 = vmatprep.subr.bf16.mxu0 0
        %341 = vmatpush1.bf16.msra.mxu0 %v331
        %342 = vmatprep.subr.bf16.mxu0 0
        %343 = vmatpush1.bf16.msra.mxu0 0
        %344 = vmatprep.subr.bf16.mxu0 0
        %345 = vmatpush1.bf16.msra.mxu0 0
        %346 = vmatprep.subr.bf16.mxu0 0
        %347 = vmatpush1.bf16.msra.mxu0 0
        %348 = vmatprep.subr.bf16.mxu0 0
        %349 = vmatpush1.bf16.msra.mxu0 0
        %350 = vmatprep.subr.bf16.mxu0 0
        %351 = vmatpush1.bf16.msra.mxu0 0
        %352 = vmatprep.subr.bf16.mxu0 0
        %353 = vmatpush1.bf16.msra.mxu0 0
        %354 = vmatprep.subr.bf16.mxu0 0
        %355 = vmatpush1.bf16.msra.mxu0 0
        %356 = vmatprep.subr.bf16.mxu0 0
        %357 = vmatpush1.bf16.msra.mxu0 0
        %358 = vmatprep.subr.bf16.mxu0 0
        %359 = vmatpush1.bf16.msra.mxu0 0
        %360 = vmatprep.subr.bf16.mxu0 0
        %361 = vmatpush1.bf16.msra.mxu0 0
        %362 = vmatprep.subr.bf16.mxu0 0
        %363 = vmatpush1.bf16.msra.mxu0 0
        %364 = vmatprep.subr.bf16.mxu0 0
        %365 = vmatpush1.bf16.msra.mxu0 0
        %366 = vmatprep.subr.bf16.mxu0 0
        %367 = vmatpush1.bf16.msra.mxu0 0
        %368 = vmatprep.subr.bf16.mxu0 0
        %369 = vmatpush1.bf16.msra.mxu0 0
        %370 = vmatprep.mubr.bf16.mxu0 0
        %371 = vmatmul.mubr.bf16.gmra.mrb[0].mxu0 %v336
        %v372 = vpop.f32.mrb[0].mxu0
        %v373 = vadd.f32 %v320, %v372
        %v374 = vpop.f32.mrb[0].mxu0
        %v375 = vpop.f32.mrb[0].mxu0
        %v376 = vpop.f32.mrb[0].mxu0
        %377 = vdwg.mxu0
        %v378 = vld [vmem:[%s4] sm:$0xf]
        %v379 = vld [vmem:[%s4 + $0x4] sm:$0xf]
        %v380 = vld [vmem:[%s4 + $0x8] sm:$0xf]
        %v381 = vld [vmem:[%s4 + $0xc] sm:$0xf]
        %v382 = vpack.c.bf16 %v304, %v302
        %v383 = vpack.c.bf16 %v305, %v303
        %v384 = vpack.c.bf16 %v308, %v306
        %v385 = vpack.c.bf16 %v309, %v307
        %v386 = vld [vmem:[%s5] sm:$0xff]
        %v387 = vld [vmem:[%s5 + $0x8] sm:$0xff]
        %v388 = vld [vmem:[%s5 + $0x10] sm:$0xff]
        %v389 = vld [vmem:[%s5 + $0x18] sm:$0xff]
        %391 = vset.pattern.permute.xlu0 0
        %392 = vperm.xlu0 %391, %v386
        %v393 = vpop.permute.xlu0 %392
        %396 = vset.pattern.permute.xlu0 0
        %397 = vperm.xlu0 %396, %v387
        %v398 = vpop.permute.xlu0 %397
        %401 = vset.pattern.permute.xlu0 0
        %402 = vperm.xlu0 %401, %v388
        %v403 = vpop.permute.xlu0 %402
        %406 = vset.pattern.permute.xlu0 0
        %407 = vperm.xlu0 %406, %v389
        %v408 = vpop.permute.xlu0 %407
        %v414 = vunpack.c.l.b16 %v378
        %v415 = vunpack.c.l.b16 %v379
        %v416 = vunpack.c.l.b16 %v380
        %v417 = vunpack.c.l.b16 %v381
        %v418 = vpack.c.b16 %v415, %v414
        %v419 = vpack.c.b16 %v417, %v416
        %v421 = vsel %vm334, %v418, 0
        %v424 = vsel %vm334, %v419, 0
        %426 = vmatprep.subr.bf16.mxu0 %v383
        %427 = vmatpush1.bf16.msra.mxu0 %v382
        %428 = vmatprep.subr.bf16.mxu0 %v385
        %429 = vmatpush1.bf16.msra.mxu0 %v384
        %430 = vmatprep.subr.bf16.mxu0 0
        %431 = vmatpush1.bf16.msra.mxu0 0
        %432 = vmatprep.subr.bf16.mxu0 0
        %433 = vmatpush1.bf16.msra.mxu0 0
        %434 = vmatprep.subr.bf16.mxu0 0
        %435 = vmatpush1.bf16.msra.mxu0 0
        %436 = vmatprep.subr.bf16.mxu0 0
        %437 = vmatpush1.bf16.msra.mxu0 0
        %438 = vmatprep.subr.bf16.mxu0 0
        %439 = vmatpush1.bf16.msra.mxu0 0
        %440 = vmatprep.subr.bf16.mxu0 0
        %441 = vmatpush1.bf16.msra.mxu0 0
        %442 = vmatprep.subr.bf16.mxu0 0
        %443 = vmatpush1.bf16.msra.mxu0 0
        %444 = vmatprep.subr.bf16.mxu0 0
        %445 = vmatpush1.bf16.msra.mxu0 0
        %446 = vmatprep.subr.bf16.mxu0 0
        %447 = vmatpush1.bf16.msra.mxu0 0
        %448 = vmatprep.subr.bf16.mxu0 0
        %449 = vmatpush1.bf16.msra.mxu0 0
        %450 = vmatprep.subr.bf16.mxu0 0
        %451 = vmatpush1.bf16.msra.mxu0 0
        %452 = vmatprep.subr.bf16.mxu0 0
        %453 = vmatpush1.bf16.msra.mxu0 0
        %454 = vmatprep.subr.bf16.mxu0 0
        %455 = vmatpush1.bf16.msra.mxu0 0
        %456 = vmatprep.subr.bf16.mxu0 0
        %457 = vmatpush1.bf16.msra.mxu0 0
        %458 = vmatprep.mubr.bf16.mxu0 0
        %459 = vmatmul.mubr.bf16.gmra.mrb[0].mxu0 %v421
        %v460 = vpop.f32.mrb[0].mxu0
        %v461 = vadd.f32 %v393, %v460
        %v462 = vpop.f32.mrb[0].mxu0
        %v463 = vadd.f32 %v393, %v462
        %v464 = vpop.f32.mrb[0].mxu0
        %v465 = vadd.f32 %v398, %v464
        %v466 = vpop.f32.mrb[0].mxu0
        %v467 = vadd.f32 %v398, %v466
        %468 = vmatprep.mubr.bf16.mxu0 0
        %469 = vmatmul.mubr.bf16.gmra.mrb[0].mxu0 %v424
        %v470 = vpop.f32.mrb[0].mxu0
        %v471 = vadd.f32 %v403, %v470
        %v472 = vpop.f32.mrb[0].mxu0
        %v473 = vadd.f32 %v403, %v472
        %v474 = vpop.f32.mrb[0].mxu0
        %v475 = vadd.f32 %v408, %v474
        %v476 = vpop.f32.mrb[0].mxu0
        %v477 = vadd.f32 %v408, %v476
        %478 = vdwg.mxu0
        %v479 = vmul.f32 %v373, 0.35355338
        %481 = vrot.lane.b32.xlu0 %v479, 120
        %v482 = vpop.permute.xlu0 %481
        %484 = vrot.lane.b32.xlu0 %v479, 112
        %v485 = vpop.permute.xlu0 %484
        %487 = vrot.lane.b32.xlu0 %v479, 104
        %v488 = vpop.permute.xlu0 %487
        %v490 = vcombine.low %v479, %v485
        %v491 = vcombine.high %v479, %v485
        %v493 = vunpack.c.l.s4 1983009808
        %v494 = vunpack.c.0.s8 %v493
        %v495 = vlaneseq
        %v496 = vshrl.u32 %v495, 7
        %v497 = vsub.s32 %v494, %v496
        %v498 = vrot.slane %v490, %v497
        %v500 = vunpack.c.l.s4 1983009808
        %v501 = vunpack.c.0.s8 %v500
        %v502 = vlaneseq
        %v503 = vshrl.u32 %v502, 7
        %v504 = vsub.s32 %v501, %v503
        %v505 = vrot.slane %v491, %v504
        %v506 = vcombine.low %v482, %v488
        %v507 = vcombine.high %v482, %v488
        %v509 = vunpack.c.l.s4 1983009808
        %v510 = vunpack.c.0.s8 %v509
        %v511 = vlaneseq
        %v512 = vshrl.u32 %v511, 7
        %v513 = vsub.s32 %v510, %v512
        %v514 = vrot.slane %v506, %v513
        %v516 = vunpack.c.l.s4 1983009808
        %v517 = vunpack.c.0.s8 %v516
        %v518 = vlaneseq
        %v519 = vshrl.u32 %v518, 7
        %v520 = vsub.s32 %v517, %v519
        %v521 = vrot.slane %v507, %v520
        %v522 = vcombine.low %v498, %v514
        %v523 = vcombine.high %v498, %v514
        %v525 = vunpack.c.l.s4 1934713408
        %v526 = vunpack.c.0.s8 %v525
        %v527 = vlaneseq
        %v528 = vshrl.u32 %v527, 7
        %v529 = vsub.s32 %v526, %v528
        %v530 = vrot.slane %v522, %v529
        %v532 = vunpack.c.l.s4 1934713408
        %v533 = vunpack.c.0.s8 %v532
        %v534 = vlaneseq
        %v535 = vshrl.u32 %v534, 7
        %v536 = vsub.s32 %v533, %v535
        %v537 = vrot.slane %v523, %v536
        %v538 = vcombine.low %v505, %v521
        %v539 = vcombine.high %v505, %v521
        %v541 = vunpack.c.l.s4 1934713408
        %v542 = vunpack.c.0.s8 %v541
        %v543 = vlaneseq
        %v544 = vshrl.u32 %v543, 7
        %v545 = vsub.s32 %v542, %v544
        %v546 = vrot.slane %v538, %v545
        %v548 = vunpack.c.l.s4 1934713408
        %v549 = vunpack.c.0.s8 %v548
        %v550 = vlaneseq
        %v551 = vshrl.u32 %v550, 7
        %v552 = vsub.s32 %v549, %v551
        %v553 = vrot.slane %v539, %v552
        %v554 = vcombine.high %v530, 0.0
        %v555 = vcombine.high %v537, 0.0
        %v556 = vcombine.high %v546, 0.0
        %v557 = vcombine.high %v553, 0.0
        %v558 = vcombine.low %v530, %v537
        %v560 = vunpack.c.l.s4 1983009808
        %v561 = vunpack.c.0.s8 %v560
        %v562 = vlaneseq
        %v563 = vshrl.u32 %v562, 7
        %v564 = vsub.s32 %v561, %v563
        %v565 = vrot.slane %v558, %v564
        %v566 = vcombine.low %v554, %v555
        %v568 = vunpack.c.l.s4 1983009808
        %v569 = vunpack.c.0.s8 %v568
        %v570 = vlaneseq
        %v571 = vshrl.u32 %v570, 7
        %v572 = vsub.s32 %v569, %v571
        %v573 = vrot.slane %v566, %v572
        %v574 = vcombine.low %v546, %v553
        %v576 = vunpack.c.l.s4 1983009808
        %v577 = vunpack.c.0.s8 %v576
        %v578 = vlaneseq
        %v579 = vshrl.u32 %v578, 7
        %v580 = vsub.s32 %v577, %v579
        %v581 = vrot.slane %v574, %v580
        %v582 = vcombine.low %v556, %v557
        %v584 = vunpack.c.l.s4 1983009808
        %v585 = vunpack.c.0.s8 %v584
        %v586 = vlaneseq
        %v587 = vshrl.u32 %v586, 7
        %v588 = vsub.s32 %v585, %v587
        %v589 = vrot.slane %v582, %v588
        %v590 = vcombine.low %v565, %v573
        %v591 = vcombine.high %v565, %v573
        %v593 = vunpack.c.l.s4 1934713408
        %v594 = vunpack.c.0.s8 %v593
        %v595 = vlaneseq
        %v596 = vshrl.u32 %v595, 7
        %v597 = vsub.s32 %v594, %v596
        %v598 = vrot.slane %v590, %v597
        %v600 = vunpack.c.l.s4 1934713408
        %v601 = vunpack.c.0.s8 %v600
        %v602 = vlaneseq
        %v603 = vshrl.u32 %v602, 7
        %v604 = vsub.s32 %v601, %v603
        %v605 = vrot.slane %v591, %v604
        %v606 = vcombine.low %v581, %v589
        %v607 = vcombine.high %v581, %v589
        %v609 = vunpack.c.l.s4 1934713408
        %v610 = vunpack.c.0.s8 %v609
        %v611 = vlaneseq
        %v612 = vshrl.u32 %v611, 7
        %v613 = vsub.s32 %v610, %v612
        %v614 = vrot.slane %v606, %v613
        %v616 = vunpack.c.l.s4 1934713408
        %v617 = vunpack.c.0.s8 %v616
        %v618 = vlaneseq
        %v619 = vshrl.u32 %v618, 7
        %v620 = vsub.s32 %v617, %v619
        %v621 = vrot.slane %v607, %v620
        %v622 = vcombine.low %v598, %v614
        %v623 = vcombine.high %v598, %v614
        %v624 = vcombine.low %v605, %v621
        %v625 = vcombine.high %v605, %v621
        %v626 = vpack.c.bf16 %v622, %v622
        %v627 = vpack.c.bf16 %v623, %v623
        %v628 = vpack.c.bf16 %v624, %v624
        %v629 = vpack.c.bf16 %v625, %v625
        %v630 = vpack.c.bf16 %v461, %v461
        %v631 = vpack.c.bf16 %v463, %v463
        %v632 = vpack.c.bf16 %v465, %v465
        %v633 = vpack.c.bf16 %v467, %v467
        %v634 = vpack.c.bf16 %v471, %v471
        %v635 = vpack.c.bf16 %v473, %v473
        %v636 = vpack.c.bf16 %v475, %v475
        %v637 = vpack.c.bf16 %v477, %v477
        %vm638 = vcmask 64512
        %v640 = vsel %vm638, %v626, 0
        %vm642 = vcmask 1043456
        %v644 = vsel %vm642, %v630, 0
        %v647 = vsel %vm642, %v631, 0
        %649 = vmatprep.subr.bf16.mxu0 %v647
        %650 = vmatpush1.bf16.msra.mxu0 %v644
        %651 = vmatprep.subr.bf16.mxu0 0
        %652 = vmatpush1.bf16.msra.mxu0 0
        %653 = vmatprep.subr.bf16.mxu0 0
        %654 = vmatpush1.bf16.msra.mxu0 0
        %655 = vmatprep.subr.bf16.mxu0 0
        %656 = vmatpush1.bf16.msra.mxu0 0
        %657 = vmatprep.subr.bf16.mxu0 0
        %658 = vmatpush1.bf16.msra.mxu0 0
        %659 = vmatprep.subr.bf16.mxu0 0
        %660 = vmatpush1.bf16.msra.mxu0 0
        %661 = vmatprep.subr.bf16.mxu0 0
        %662 = vmatpush1.bf16.msra.mxu0 0
        %663 = vmatprep.subr.bf16.mxu0 0
        %664 = vmatpush1.bf16.msra.mxu0 0
        %665 = vmatprep.subr.bf16.mxu0 0
        %666 = vmatpush1.bf16.msra.mxu0 0
        %667 = vmatprep.subr.bf16.mxu0 0
        %668 = vmatpush1.bf16.msra.mxu0 0
        %669 = vmatprep.subr.bf16.mxu0 0
        %670 = vmatpush1.bf16.msra.mxu0 0
        %671 = vmatprep.subr.bf16.mxu0 0
        %672 = vmatpush1.bf16.msra.mxu0 0
        %673 = vmatprep.subr.bf16.mxu0 0
        %674 = vmatpush1.bf16.msra.mxu0 0
        %675 = vmatprep.subr.bf16.mxu0 0
        %676 = vmatpush1.bf16.msra.mxu0 0
        %677 = vmatprep.subr.bf16.mxu0 0
        %678 = vmatpush1.bf16.msra.mxu0 0
        %679 = vmatprep.subr.bf16.mxu0 0
        %680 = vmatpush1.bf16.msra.mxu0 0
        %681 = vmatprep.mubr.bf16.mxu0 0
        %682 = vmatmul.mubr.bf16.gmra.mrb[0].mxu0 %v640
        %v683 = vpop.f32.mrb[0].mxu0
        %v684 = vadd.f32 0.0, %v683
        %v685 = vpop.f32.mrb[0].mxu0
        %v686 = vadd.f32 0.0, %v685
        %v687 = vpop.f32.mrb[0].mxu0
        %v688 = vpop.f32.mrb[0].mxu0
        %689 = vdwg.mxu0
        %v691 = vsel %vm638, %v627, 0
        %v694 = vsel %vm642, %v632, 0
        %v697 = vsel %vm642, %v633, 0
        %699 = vmatprep.subr.bf16.mxu0 %v697
        %700 = vmatpush1.bf16.msra.mxu0 %v694
        %701 = vmatprep.subr.bf16.mxu0 0
        %702 = vmatpush1.bf16.msra.mxu0 0
        %703 = vmatprep.subr.bf16.mxu0 0
        %704 = vmatpush1.bf16.msra.mxu0 0
        %705 = vmatprep.subr.bf16.mxu0 0
        %706 = vmatpush1.bf16.msra.mxu0 0
        %707 = vmatprep.subr.bf16.mxu0 0
        %708 = vmatpush1.bf16.msra.mxu0 0
        %709 = vmatprep.subr.bf16.mxu0 0
        %710 = vmatpush1.bf16.msra.mxu0 0
        %711 = vmatprep.subr.bf16.mxu0 0
        %712 = vmatpush1.bf16.msra.mxu0 0
        %713 = vmatprep.subr.bf16.mxu0 0
        %714 = vmatpush1.bf16.msra.mxu0 0
        %715 = vmatprep.subr.bf16.mxu0 0
        %716 = vmatpush1.bf16.msra.mxu0 0
        %717 = vmatprep.subr.bf16.mxu0 0
        %718 = vmatpush1.bf16.msra.mxu0 0
        %719 = vmatprep.subr.bf16.mxu0 0
        %720 = vmatpush1.bf16.msra.mxu0 0
        %721 = vmatprep.subr.bf16.mxu0 0
        %722 = vmatpush1.bf16.msra.mxu0 0
        %723 = vmatprep.subr.bf16.mxu0 0
        %724 = vmatpush1.bf16.msra.mxu0 0
        %725 = vmatprep.subr.bf16.mxu0 0
        %726 = vmatpush1.bf16.msra.mxu0 0
        %727 = vmatprep.subr.bf16.mxu0 0
        %728 = vmatpush1.bf16.msra.mxu0 0
        %729 = vmatprep.subr.bf16.mxu0 0
        %730 = vmatpush1.bf16.msra.mxu0 0
        %731 = vmatprep.mubr.bf16.mxu0 0
        %732 = vmatmul.mubr.bf16.gmra.mrb[0].mxu0 %v691
        %v733 = vpop.f32.mrb[0].mxu0
        %v734 = vadd.f32 0.0, %v733
        %v735 = vpop.f32.mrb[0].mxu0
        %v736 = vadd.f32 0.0, %v735
        %v737 = vpop.f32.mrb[0].mxu0
        %v738 = vpop.f32.mrb[0].mxu0
        %739 = vdwg.mxu0
        %v741 = vsel %vm638, %v628, 0
        %v744 = vsel %vm642, %v634, 0
        %v747 = vsel %vm642, %v635, 0
        %749 = vmatprep.subr.bf16.mxu0 %v747
        %750 = vmatpush1.bf16.msra.mxu0 %v744
        %751 = vmatprep.subr.bf16.mxu0 0
        %752 = vmatpush1.bf16.msra.mxu0 0
        %753 = vmatprep.subr.bf16.mxu0 0
        %754 = vmatpush1.bf16.msra.mxu0 0
        %755 = vmatprep.subr.bf16.mxu0 0
        %756 = vmatpush1.bf16.msra.mxu0 0
        %757 = vmatprep.subr.bf16.mxu0 0
        %758 = vmatpush1.bf16.msra.mxu0 0
        %759 = vmatprep.subr.bf16.mxu0 0
        %760 = vmatpush1.bf16.msra.mxu0 0
        %761 = vmatprep.subr.bf16.mxu0 0
        %762 = vmatpush1.bf16.msra.mxu0 0
        %763 = vmatprep.subr.bf16.mxu0 0
        %764 = vmatpush1.bf16.msra.mxu0 0
        %765 = vmatprep.subr.bf16.mxu0 0
        %766 = vmatpush1.bf16.msra.mxu0 0
        %767 = vmatprep.subr.bf16.mxu0 0
        %768 = vmatpush1.bf16.msra.mxu0 0
        %769 = vmatprep.subr.bf16.mxu0 0
        %770 = vmatpush1.bf16.msra.mxu0 0
        %771 = vmatprep.subr.bf16.mxu0 0
        %772 = vmatpush1.bf16.msra.mxu0 0
        %773 = vmatprep.subr.bf16.mxu0 0
        %774 = vmatpush1.bf16.msra.mxu0 0
        %775 = vmatprep.subr.bf16.mxu0 0
        %776 = vmatpush1.bf16.msra.mxu0 0
        %777 = vmatprep.subr.bf16.mxu0 0
        %778 = vmatpush1.bf16.msra.mxu0 0
        %779 = vmatprep.subr.bf16.mxu0 0
        %780 = vmatpush1.bf16.msra.mxu0 0
        %781 = vmatprep.mubr.bf16.mxu0 0
        %782 = vmatmul.mubr.bf16.gmra.mrb[0].mxu0 %v741
        %v783 = vpop.f32.mrb[0].mxu0
        %v784 = vadd.f32 0.0, %v783
        %v785 = vpop.f32.mrb[0].mxu0
        %v786 = vadd.f32 0.0, %v785
        %v787 = vpop.f32.mrb[0].mxu0
        %v788 = vpop.f32.mrb[0].mxu0
        %789 = vdwg.mxu0
        %v791 = vsel %vm638, %v629, 0
        %v794 = vsel %vm642, %v636, 0
        %v797 = vsel %vm642, %v637, 0
        %799 = vmatprep.subr.bf16.mxu0 %v797
        %800 = vmatpush1.bf16.msra.mxu0 %v794
        %801 = vmatprep.subr.bf16.mxu0 0
        %802 = vmatpush1.bf16.msra.mxu0 0
        %803 = vmatprep.subr.bf16.mxu0 0
        %804 = vmatpush1.bf16.msra.mxu0 0
        %805 = vmatprep.subr.bf16.mxu0 0
        %806 = vmatpush1.bf16.msra.mxu0 0
        %807 = vmatprep.subr.bf16.mxu0 0
        %808 = vmatpush1.bf16.msra.mxu0 0
        %809 = vmatprep.subr.bf16.mxu0 0
        %810 = vmatpush1.bf16.msra.mxu0 0
        %811 = vmatprep.subr.bf16.mxu0 0
        %812 = vmatpush1.bf16.msra.mxu0 0
        %813 = vmatprep.subr.bf16.mxu0 0
        %814 = vmatpush1.bf16.msra.mxu0 0
        %815 = vmatprep.subr.bf16.mxu0 0
        %816 = vmatpush1.bf16.msra.mxu0 0
        %817 = vmatprep.subr.bf16.mxu0 0
        %818 = vmatpush1.bf16.msra.mxu0 0
        %819 = vmatprep.subr.bf16.mxu0 0
        %820 = vmatpush1.bf16.msra.mxu0 0
        %821 = vmatprep.subr.bf16.mxu0 0
        %822 = vmatpush1.bf16.msra.mxu0 0
        %823 = vmatprep.subr.bf16.mxu0 0
        %824 = vmatpush1.bf16.msra.mxu0 0
        %825 = vmatprep.subr.bf16.mxu0 0
        %826 = vmatpush1.bf16.msra.mxu0 0
        %827 = vmatprep.subr.bf16.mxu0 0
        %828 = vmatpush1.bf16.msra.mxu0 0
        %829 = vmatprep.subr.bf16.mxu0 0
        %830 = vmatpush1.bf16.msra.mxu0 0
        %831 = vmatprep.mubr.bf16.mxu0 0
        %832 = vmatmul.mubr.bf16.gmra.mrb[0].mxu0 %v791
        %v833 = vpop.f32.mrb[0].mxu0
        %v834 = vadd.f32 0.0, %v833
        %v835 = vpop.f32.mrb[0].mxu0
        %v836 = vadd.f32 0.0, %v835
        %v837 = vpop.f32.mrb[0].mxu0
        %v838 = vpop.f32.mrb[0].mxu0
        %839 = vdwg.mxu0
        %v848 = vcombine.low %v684, %v686
        %v849 = vcombine.high %v684, %v686
        %v850 = vcombine.low %v734, %v736
        %v851 = vcombine.high %v734, %v736
        %v852 = vcombine.low %v784, %v786
        %v853 = vcombine.high %v784, %v786
        %v854 = vcombine.low %v834, %v836
        %v855 = vcombine.high %v834, %v836
        %v864 = vcombine.low %v848, %v852
        %v865 = vcombine.high %v848, %v852
        %v867 = vunpack.c.l.s4 1983009808
        %v868 = vunpack.c.0.s8 %v867
        %v869 = vlaneseq
        %v870 = vshrl.u32 %v869, 7
        %v871 = vsub.s32 %v868, %v870
        %v872 = vrot.slane %v864, %v871
        %v874 = vunpack.c.l.s4 1983009808
        %v875 = vunpack.c.0.s8 %v874
        %v876 = vlaneseq
        %v877 = vshrl.u32 %v876, 7
        %v878 = vsub.s32 %v875, %v877
        %v879 = vrot.slane %v865, %v878
        %v880 = vcombine.low %v850, %v854
        %v881 = vcombine.high %v850, %v854
        %v883 = vunpack.c.l.s4 1983009808
        %v884 = vunpack.c.0.s8 %v883
        %v885 = vlaneseq
        %v886 = vshrl.u32 %v885, 7
        %v887 = vsub.s32 %v884, %v886
        %v888 = vrot.slane %v880, %v887
        %v890 = vunpack.c.l.s4 1983009808
        %v891 = vunpack.c.0.s8 %v890
        %v892 = vlaneseq
        %v893 = vshrl.u32 %v892, 7
        %v894 = vsub.s32 %v891, %v893
        %v895 = vrot.slane %v881, %v894
        %v896 = vcombine.low %v872, %v888
        %v897 = vcombine.high %v872, %v888
        %v899 = vunpack.c.l.s4 1934713408
        %v900 = vunpack.c.0.s8 %v899
        %v901 = vlaneseq
        %v902 = vshrl.u32 %v901, 7
        %v903 = vsub.s32 %v900, %v902
        %v904 = vrot.slane %v896, %v903
        %v906 = vunpack.c.l.s4 1934713408
        %v907 = vunpack.c.0.s8 %v906
        %v908 = vlaneseq
        %v909 = vshrl.u32 %v908, 7
        %v910 = vsub.s32 %v907, %v909
        %v911 = vrot.slane %v897, %v910
        %v912 = vcombine.low %v879, %v895
        %v913 = vcombine.high %v879, %v895
        %v915 = vunpack.c.l.s4 1934713408
        %v916 = vunpack.c.0.s8 %v915
        %v917 = vlaneseq
        %v918 = vshrl.u32 %v917, 7
        %v919 = vsub.s32 %v916, %v918
        %v920 = vrot.slane %v912, %v919
        %v922 = vunpack.c.l.s4 1934713408
        %v923 = vunpack.c.0.s8 %v922
        %v924 = vlaneseq
        %v925 = vshrl.u32 %v924, 7
        %v926 = vsub.s32 %v923, %v925
        %v927 = vrot.slane %v913, %v926
        %v928 = vcombine.low %v904, %v920
        %v929 = vcombine.high %v904, %v920
        %v930 = vcombine.low %v911, %v927
        %v931 = vcombine.high %v911, %v927
        %v932 = vcombine.low %v849, %v853
        %v933 = vcombine.high %v849, %v853
        %v935 = vunpack.c.l.s4 1983009808
        %v936 = vunpack.c.0.s8 %v935
        %v937 = vlaneseq
        %v938 = vshrl.u32 %v937, 7
        %v939 = vsub.s32 %v936, %v938
        %v940 = vrot.slane %v932, %v939
        %v942 = vunpack.c.l.s4 1983009808
        %v943 = vunpack.c.0.s8 %v942
        %v944 = vlaneseq
        %v945 = vshrl.u32 %v944, 7
        %v946 = vsub.s32 %v943, %v945
        %v947 = vrot.slane %v933, %v946
        %v948 = vcombine.low %v851, %v855
        %v949 = vcombine.high %v851, %v855
        %v951 = vunpack.c.l.s4 1983009808
        %v952 = vunpack.c.0.s8 %v951
        %v953 = vlaneseq
        %v954 = vshrl.u32 %v953, 7
        %v955 = vsub.s32 %v952, %v954
        %v956 = vrot.slane %v948, %v955
        %v958 = vunpack.c.l.s4 1983009808
        %v959 = vunpack.c.0.s8 %v958
        %v960 = vlaneseq
        %v961 = vshrl.u32 %v960, 7
        %v962 = vsub.s32 %v959, %v961
        %v963 = vrot.slane %v949, %v962
        %v964 = vcombine.low %v940, %v956
        %v965 = vcombine.high %v940, %v956
        %v967 = vunpack.c.l.s4 1934713408
        %v968 = vunpack.c.0.s8 %v967
        %v969 = vlaneseq
        %v970 = vshrl.u32 %v969, 7
        %v971 = vsub.s32 %v968, %v970
        %v972 = vrot.slane %v964, %v971
        %v974 = vunpack.c.l.s4 1934713408
        %v975 = vunpack.c.0.s8 %v974
        %v976 = vlaneseq
        %v977 = vshrl.u32 %v976, 7
        %v978 = vsub.s32 %v975, %v977
        %v979 = vrot.slane %v965, %v978
        %v980 = vcombine.low %v947, %v963
        %v981 = vcombine.high %v947, %v963
        %v983 = vunpack.c.l.s4 1934713408
        %v984 = vunpack.c.0.s8 %v983
        %v985 = vlaneseq
        %v986 = vshrl.u32 %v985, 7
        %v987 = vsub.s32 %v984, %v986
        %v988 = vrot.slane %v980, %v987
        %v990 = vunpack.c.l.s4 1934713408
        %v991 = vunpack.c.0.s8 %v990
        %v992 = vlaneseq
        %v993 = vshrl.u32 %v992, 7
        %v994 = vsub.s32 %v991, %v993
        %v995 = vrot.slane %v981, %v994
        %v996 = vcombine.low %v972, %v988
        %v997 = vcombine.high %v972, %v988
        %v998 = vcombine.low %v979, %v995
        %v999 = vcombine.high %v979, %v995
        %v1008 = vcombine.low %v928, %v929
        %v1009 = vcombine.high %v928, %v929
        %v1010 = vcombine.low %v930, %v931
        %v1011 = vcombine.high %v930, %v931
        %v1012 = vcombine.low %v996, %v997
        %v1013 = vcombine.high %v996, %v997
        %v1014 = vcombine.low %v998, %v999
        %v1015 = vcombine.high %v998, %v999
        %v1024 = vmax.f32 %v1008, %v1012
        %v1025 = vmax.f32 %v1009, %v1013
        %v1026 = vmax.f32 %v1010, %v1014
        %v1027 = vmax.f32 %v1011, %v1015
        %v1028 = vmax.f32 %v1024, %v1025
        %v1029 = vmax.f32 %v1026, %v1027
        %v1030 = vmax.f32 %v1028, %v1029
        %1031 = vmax.xlane.f32.xlu0 %v1030
        %v1032 = vpop.xlane.xlu0 %1031
        %v1033 = vrot.slane %v1032, 4
        %v1034 = vmax.f32 %v1032, %v1033
        %v1035 = vrot.slane %v1034, 2
        %v1036 = vmax.f32 %v1034, %v1035
        %v1037 = vrot.slane %v1036, 1
        %v1038 = vmax.f32 %v1036, %v1037
        %s1039 = vtos %v1038
        %v1040 = vstv %s1039
        %v1041 = vsub.f32 %v928, %v1040
        %v1042 = vsub.f32 %v929, %v1040
        %v1043 = vsub.f32 %v930, %v1040
        %v1044 = vsub.f32 %v931, %v1040
        %v1045 = vsub.f32 %v996, %v1040
        %v1046 = vsub.f32 %v997, %v1040
        %v1047 = vsub.f32 %v998, %v1040
        %v1048 = vsub.f32 %v999, %v1040
        %v1049 = vmul.f32 %v1041, 1.442695
        %v1050 = vpow.pop %v1049
        %v1051 = vmul.f32 %v1042, 1.442695
        %v1052 = vpow.pop %v1051
        %v1053 = vmul.f32 %v1043, 1.442695
        %v1054 = vpow.pop %v1053
        %v1055 = vmul.f32 %v1044, 1.442695
        %v1056 = vpow.pop %v1055
        %v1057 = vmul.f32 %v1045, 1.442695
        %v1058 = vpow.pop %v1057
        %v1059 = vmul.f32 %v1046, 1.442695
        %v1060 = vpow.pop %v1059
        %v1061 = vmul.f32 %v1047, 1.442695
        %v1062 = vpow.pop %v1061
        %v1063 = vmul.f32 %v1048, 1.442695
        %v1064 = vpow.pop %v1063
        %v1073 = vcombine.low %v1050, %v1052
        %v1074 = vcombine.high %v1050, %v1052
        %v1075 = vcombine.low %v1054, %v1056
        %v1076 = vcombine.high %v1054, %v1056
        %v1077 = vcombine.low %v1058, %v1060
        %v1078 = vcombine.high %v1058, %v1060
        %v1079 = vcombine.low %v1062, %v1064
        %v1080 = vcombine.high %v1062, %v1064
        %v1089 = vadd.f32 %v1073, %v1074
        %v1090 = vadd.f32 %v1089, %v1075
        %v1091 = vadd.f32 %v1090, %v1076
        %v1092 = vadd.f32 %v1091, %v1077
        %v1093 = vadd.f32 %v1092, %v1078
        %v1094 = vadd.f32 %v1093, %v1079
        %v1095 = vadd.f32 %v1094, %v1080
        %1096 = vadd.xlane.f32.xlu0 %v1095
        %v1097 = vpop.xlane.xlu0 %1096
        %v1098 = vrot.slane %v1097, 4
        %v1099 = vadd.f32 %v1097, %v1098
        %v1100 = vrot.slane %v1099, 2
        %v1101 = vadd.f32 %v1099, %v1100
        %v1102 = vrot.slane %v1101, 1
        %v1103 = vadd.f32 %v1101, %v1102
        %s1104 = vtos %v1103
        %v1105 = vstv %s1104
        %v1106 = vrcp.pop %v1105
        %v1107 = vmul.f32 %v1050, %v1106
        %v1108 = vmul.f32 %v1052, %v1106
        %v1109 = vmul.f32 %v1054, %v1106
        %v1110 = vmul.f32 %v1056, %v1106
        %v1111 = vmul.f32 %v1058, %v1106
        %v1112 = vmul.f32 %v1060, %v1106
        %v1113 = vmul.f32 %v1062, %v1106
        %v1114 = vmul.f32 %v1064, %v1106
        %v1123 = vcombine.low %v1107, %v1108
        %v1124 = vcombine.high %v1107, %v1108
        %v1125 = vcombine.low %v1109, %v1110
        %v1126 = vcombine.high %v1109, %v1110
        %v1127 = vcombine.low %v1111, %v1112
        %v1128 = vcombine.high %v1111, %v1112
        %v1129 = vcombine.low %v1113, %v1114
        %v1130 = vcombine.high %v1113, %v1114
        %1139 = vst [vmem:[%s295] sm:$0xff] %v1123
        %1140 = vst [vmem:[%s295 + $0x8] sm:$0xff] %v1124
        %1141 = vst [vmem:[%s295 + $0x10] sm:$0xff] %v1125
        %1142 = vst [vmem:[%s295 + $0x18] sm:$0xff] %v1126
        %1143 = vst [vmem:[%s295 + $0x20] sm:$0xff] %v1127
        %1144 = vst [vmem:[%s295 + $0x28] sm:$0xff] %v1128
        %1145 = vst [vmem:[%s295 + $0x30] sm:$0xff] %v1129
        %1146 = vst [vmem:[%s295 + $0x38] sm:$0xff] %v1130
        %s1147 = sand.u32 %s168, 1
        %s1148 = scalar_lea.sflag [#allocation4], %s1147
        %s1149 = sand.u32 %s168, 1
        %s1150 = smul.addr %s1149, 64
        %s1151 = scalar_lea.vmem [#allocation7], %s1150
        // Predicated region
        $region53: #{tpu_custom_call.1} parent=43 // pred_check
          %p1152 = pneg %p178
        $region54: #{tpu_custom_call.1} parent=43 // pred_check_branch
          %1154 = sbr.rel (%p1152) target = $region56
        $region55: #{tpu_custom_call.1} parent=43 // pred_region
          %s1156 = ssub.s32 1024, 1024
          %1157 = vsyncadd %s1148, %s1156
          %s1158 = smul.addr %s24, 8
          %s1159 = smul.addr %s1158, 128
          %s1160 = scalar_lea.hbm %s6, %s1159
          %s1161 = sshll.u32 %s1151, 4
          %s1162 = int_to_ptr.vmem [resolvable:$true] %s1161
          %1167 = dma.vmem_to_hbm [thread:$0]  %s1162, 1024, %s1160, %s1148, 256, 256, 16
        $region56: #{tpu_custom_call.1} parent=43 // pred_fallthru
          _
      $region44: #{tpu_custom_call.1} parent=5 // pred_fallthru
        _
      %p1168 = scmp.le.s32.totalorder 2, %s19
      // Predicated region
      $region57: #{tpu_custom_call.1} parent=5 // pred_check
        %p1169 = pneg %p1168
      $region58: #{tpu_custom_call.1} parent=5 // pred_check_branch
        %1171 = sbr.rel (%p1169) target = $region60
      $region59: #{tpu_custom_call.1} parent=5 // pred_region
        %s1172 = ssub.s32 %s19, 2
        // Predicated region
        $region61: #{tpu_custom_call.1} parent=59 // pred_check
          %p1173 = pneg %p184
        $region62: #{tpu_custom_call.1} parent=59 // pred_check_branch
          %1175 = sbr.rel (%p1173) target = $region64
        $region63: #{tpu_custom_call.1} parent=59 // pred_region
          %s1176 = sand.u32 %s169, 1
          %s1177 = scalar_lea.sflag [#allocation4], %s1176
          %s1178 = sand.u32 %s169, 1
          %s1179 = smul.addr %s1178, 64
          %s1180 = scalar_lea.vmem [#allocation7], %s1179
          %1181 = dma.done %s1177, 1024
        $region64: #{tpu_custom_call.1} parent=59 // pred_fallthru
          _
      $region60: #{tpu_custom_call.1} parent=5 // pred_fallthru
        _
    $region6: #{tpu_custom_call.1} parent=1 // loop_footer
      %s23 = sadd.s32 1, %s19
    $region7: #{tpu_custom_call.1} parent=1 // loop_footer_branch
      %18 = sbr.rel target = $region3
    $region8: #{tpu_custom_call.1} parent=1 // loop_exit
      _
    %1182 = vsyncpa [#allocation3], 1
    %s1183 = scalar_lea.sflag [#allocation3], 1
    %1184 = vsyncpa %s1183, 1
    %1185 = vsyncpa [#allocation6], 1
    %1186 = vsyncpa [#allocation4], 1
    %s1187 = scalar_lea.sflag [#allocation4], 1
    %1188 = vsyncpa %s1187, 1

</llo_original>
